<compile_context>
chip_gen: v7x
topology: tpu7x:2x2x1
jax: 0.10.0
libtpu: 0.0.40
codegen_flags: <defaults>
</compile_context>

<pallas_src>
import jax
import jax.numpy as jnp
from jax.experimental import pallas as pl
from jax.experimental.pallas import tpu as pltpu


def _copy_kernel(x_ref, o_ref):
    # Lane-dense 2-D copy tile.  Placeholder body for future fused compute
    # (e.g. normalization / encoder first layer); today it is a pure copy.
    # TODO(synk): if a standalone (non-fused) copy is ever needed in prod,
    # replace with memory_space=pl.ANY + chunked pltpu.make_async_copy
    # (HBM->HBM DMA, no VMEM staging at all).
    o_ref[...] = x_ref[...]


def _sublane_multiple(dtype) -> int:
    """Dtype-native sublane packing multiple: 8 (32-bit), 16 (bf16), 32 (int8)."""
    bits = jnp.dtype(dtype).itemsize * 8
    return max(8, (32 // max(1, bits)) * 8)


def _pick_tiles(b: int, flat_dim: int, dtype,
                target_block_bytes: int = 4 << 20):
    """Choose (tb, tf) so one block is ~<= target_block_bytes.

    Rules enforced:
      * tf == flat_dim, or a multiple of 128 (lane-dense stores, (8,128) rule).
      * tb == b, or a multiple of the dtype-native sublane count.
      * if b >= 2 * sublane, produce >= 2 batch tiles (v7x: 2 TensorCores).
    """
    itemsize = jnp.dtype(dtype).itemsize
    sub = _sublane_multiple(dtype)

    # Lane-axis (flat_dim) tiling: only when even a minimum-height block
    # (sub rows x full flat_dim) would exceed the block budget.
    row_bytes = flat_dim * itemsize
    if row_bytes * sub > target_block_bytes and flat_dim > 128:
        tf = (target_block_bytes // (sub * itemsize)) // 128 * 128
        tf = max(128, min(tf, (flat_dim // 128) * 128 if flat_dim >= 128 else 128))
    else:
        tf = flat_dim

    # Batch-axis tiling.
    rows = max(1, target_block_bytes // max(1, tf * itemsize))
    if rows >= b:
        tb = b
    else:
        tb = min(b, max(sub, (rows // sub) * sub))

    # Guarantee >= 2 batch tiles when possible so v7x's two TensorCores both
    # stream (no-op cost on single-TC v5e/v6e).
    if tb == b and b >= 2 * sub:
        half = pl.cdiv(b, 2)
        tb = max(sub, pl.cdiv(half, sub) * sub)
        if tb >= b:
            tb = b

    return tb, tf


def base_ae_preprocess(x: jax.Array) -> jax.Array:
    """Default BaseAE.preprocess: metadata-only flatten (recommended path)."""
    if x.ndim <= 2:
        return x
    return jnp.reshape(x, (x.shape[0], -1))


def base_ae_preprocess_pallas(x: jax.Array,
                              target_block_bytes: int = 4 << 20) -> jax.Array:
    """Pallas-kernel variant of preprocess (kept only for future op fusion).

    Reshapes to 2-D in the wrapper (free), then streams lane-dense
    [tb, tf] blocks through a pipelined copy kernel, tiled over batch and —
    for very wide rows — over flat_dim as well.
    """
    if x.ndim <= 2:
        return x

    b = x.shape[0]
    flat_dim = 1
    for d in x.shape[1:]:
        flat_dim *= d

    # Metadata-only reshape in the wrapper: kernel sees a clean 2-D slab.
    x2d = jnp.reshape(x, (b, flat_dim))
    itemsize = x2d.dtype.itemsize

    tb, tf = _pick_tiles(b, flat_dim, x2d.dtype, target_block_bytes)
    block_bytes = tb * tf * itemsize
    # Double-buffered in + out footprint = 4x block; add headroom.
    vmem_limit = min(int(block_bytes) * 4 + (4 << 20), 48 << 20)

    cost = pl.CostEstimate(flops=0, transcendentals=0,
                           bytes_accessed=2 * b * flat_dim * itemsize)

    if tf == flat_dim:
        grid = (pl.cdiv(b, tb),)
        in_spec = pl.BlockSpec((tb, flat_dim), lambda i: (i, 0))
        out_spec = pl.BlockSpec((tb, flat_dim), lambda i: (i, 0))
        semantics = ("parallel",)
    else:
        grid = (pl.cdiv(b, tb), pl.cdiv(flat_dim, tf))
        in_spec = pl.BlockSpec((tb, tf), lambda i, j: (i, j))
        out_spec = pl.BlockSpec((tb, tf), lambda i, j: (i, j))
        semantics = ("parallel", "parallel")

    return pl.pallas_call(
        _copy_kernel,
        out_shape=jax.ShapeDtypeStruct((b, flat_dim), x.dtype),
        grid=grid,
        in_specs=[in_spec],
        out_specs=out_spec,
        cost_estimate=cost,
        compiler_params=pltpu.CompilerParams(
            dimension_semantics=semantics,
            vmem_limit_bytes=vmem_limit,
        ),
    )(x2d)


class BaseAEPallas:
    """JAX/Pallas mirror of the abstract BaseAE module."""

    def preprocess(self, x: jax.Array, use_pallas: bool = False) -> jax.Array:
        if use_pallas:
            return base_ae_preprocess_pallas(x)
        return base_ae_preprocess(x)

    def forward(self, x: jax.Array) -> jax.Array:
        # TODO(synk): abstract in the reference module (raises NotImplementedError).
        raise NotImplementedError("Subclasses must implement this method.")

    def encode(self, x: jax.Array) -> jax.Array:
        # TODO(synk): abstract in the reference module (raises NotImplementedError).
        raise NotImplementedError("Subclasses must implement this method.")

    def training_loss(self, batch: jax.Array) -> jax.Array:
        # TODO(synk): abstract in the reference module (raises NotImplementedError).
        raise NotImplementedError("Subclasses must implement this method.")

    def testing_loss(self, batch: jax.Array) -> jax.Array:
        # TODO(synk): abstract in the reference module (raises NotImplementedError).
        raise NotImplementedError("Subclasses must implement this method.")


if __name__ == "__main__":
    model = BaseAEPallas()
    key = jax.random.PRNGKey(0)

    # --- Small NCHW input: batch=2, channels=4, spatial=16x16 -> flat=1024 ---
    x = jax.random.normal(key, (2, 4, 16, 16), dtype=jnp.float32)
    ref = x.reshape(x.shape[0], -1)

    # Default (recommended) path: metadata-only reshape.
    out_fast = jax.block_until_ready(model.preprocess(x))
    assert out_fast.shape == (2, 4 * 16 * 16), out_fast.shape
    assert out_fast.dtype == x.dtype
    assert jnp.array_equal(out_fast, ref)

    # Pallas path (single lane-dense block; fusion scaffolding).
    out_pallas = jax.block_until_ready(model.preprocess(x, use_pallas=True))
    assert out_pallas.shape == (2, 4 * 16 * 16), out_pallas.shape
    assert out_pallas.dtype == x.dtype
    assert jnp.array_equal(out_pallas, ref)

    # --- Batch big enough to exercise >=2 batch tiles (both TCs on v7x) ---
    xb = jax.random.normal(jax.random.PRNGKey(1), (32, 4, 16, 16),
                           dtype=jnp.float32)
    out_b = jax.block_until_ready(base_ae_preprocess_pallas(xb))
    assert jnp.array_equal(out_b, xb.reshape(32, -1))

    # --- Wide rows with a tiny block budget: exercises the 2-D grid path ---
    xw = jax.random.normal(jax.random.PRNGKey(2), (2, 8, 32, 32),
                           dtype=jnp.float32)
    out_w = jax.block_until_ready(
        base_ae_preprocess_pallas(xw, target_block_bytes=64 << 10))
    assert jnp.array_equal(out_w, xw.reshape(2, -1))

    # --- bf16 input: dtype-aware sublane rounding path ---
    xh = jax.random.normal(jax.random.PRNGKey(3), (32, 4, 16, 16),
                           dtype=jnp.bfloat16)
    out_h = jax.block_until_ready(base_ae_preprocess_pallas(xh))
    assert jnp.array_equal(out_h, xh.reshape(32, -1))

    # --- 2-D input passes through unchanged on both paths ---
    x2d = jax.random.normal(jax.random.PRNGKey(4), (2, 32), dtype=jnp.float32)
    assert jnp.array_equal(jax.block_until_ready(model.preprocess(x2d)), x2d)
    assert jnp.array_equal(
        jax.block_until_ready(model.preprocess(x2d, use_pallas=True)), x2d)

    print("KERNEL_OK")
</pallas_src>

<mosaic_0001>
module attributes {stable_mosaic.version = 11 : i64} {
  func.func @_copy_kernel(%arg0: i32, %arg1: memref<2x1024xf32, #tpu.memory_space<vmem>>, %arg2: memref<2x1024xf32, #tpu.memory_space<vmem>>) attributes {dimension_semantics = [#tpu.dimension_semantics<parallel>], iteration_bounds = array<i64: 1>, scalar_prefetch = 0 : i64, scratch_operands = 0 : i64, tpu.core_type = #tpu.core_type<tc>, window_params = [{transform_indices = @transform_0, window_bounds = array<i64: 2, 1024>}, {transform_indices = @transform_1, window_bounds = array<i64: 2, 1024>}]} {
    %c0 = arith.constant 0 : index
    %c0_0 = arith.constant 0 : index
    %0 = vector.load %arg1[%c0, %c0_0] : memref<2x1024xf32, #tpu.memory_space<vmem>>, vector<2x1024xf32>
    %c0_1 = arith.constant 0 : index
    %c0_2 = arith.constant 0 : index
    %1 = vector.load %arg2[%c0_1, %c0_2] : memref<2x1024xf32, #tpu.memory_space<vmem>>, vector<2x1024xf32>
    tpu.vector_store %arg2[%c0_1, %c0_2], %0 {strides = array<i32>} : memref<2x1024xf32, #tpu.memory_space<vmem>>, vector<2x1024xf32>,
    return
  }
  func.func @transform_0(%arg0: i32) -> (i32, i32) {
    %c0_i32 = arith.constant 0 : i32
    %c0_i32_0 = arith.constant 0 : i32
    return %arg0, %c0_i32 : i32, i32
  }
  func.func @transform_1(%arg0: i32) -> (i32, i32) {
    %c0_i32 = arith.constant 0 : i32
    %c0_i32_0 = arith.constant 0 : i32
    return %arg0, %c0_i32 : i32, i32
  }
}

</mosaic_0001>

<llo_original>
// kernel: tpu_custom_call.1
$region0: #{tpu_custom_call.1}
  #allocation0 [shape = 'u32[]', space=smem, size = 0x4, offset = 0x4, fixed_abs, tag = 'smem constant byte address 0x4 - core index']
  #allocation1 [shape = 'u32[144,128]{1,0:T(1,128)}', space=vmem, size = 0x12000, scoped, tag = 'internal scratch']
  %s0 = inlined_call_operand.hbm [shape: f32[2,1024], index: 0, kind: input, shape index: {}]
  %s1 = inlined_call_operand.hbm [shape: f32[2,1024], index: 1, kind: output, shape index: {}]
  %s2 = sld [smem:[#allocation0]]
  $region18: #{tpu_custom_call.1} parent=0
    _
  %s4 = ssub.s32 1, %s2
  %s5 = scalar_select 0, %s4, %s2
  $region1: #{tpu_custom_call.1} parent=0
    #allocation2 [shape = 'u8[8192]{0}', space=vmem, size = 0x2000, scoped, tag = 'input window, operand 0, single buffered']
    #allocation3 [shape = 's32[1]{0}', space=sflag, size = 0x4, scoped, tag = 'scoped memory for tpu_custom_call.1']
    #allocation4 [shape = 's32[1]{0}', space=sflag, size = 0x4, scoped, tag = 'scoped memory for tpu_custom_call.1']
    #allocation5 [shape = 'u8[8192]{0}', space=vmem, size = 0x2000, scoped, tag = 'output window, operand 0, single buffered']
    %6 = vsyncpa [#allocation3], 0
    %7 = vsyncpa [#allocation4], 0
    // Predicated region
    $region2: #{tpu_custom_call.1} parent=1 // pred_check
      _
    $region3: #{tpu_custom_call.1} parent=1 // pred_check_branch
      %9 = sbr.rel (0) target = $region5
    $region4: #{tpu_custom_call.1} parent=1 // pred_region
      %s11 = ssub.s32 256, 256
      %12 = vsyncadd [#allocation3], %s11
      %s14 = sshll.u32 [#allocation2], 4
      %s15 = int_to_ptr.vmem [resolvable:$true] %s14
      %17 = dma.hbm_to_vmem [thread:$0]  %s0, 256, %s15, [#allocation3]
    $region5: #{tpu_custom_call.1} parent=1 // pred_fallthru
      _
    // Predicated region
    $region6: #{tpu_custom_call.1} parent=1 // pred_check
      _
    $region7: #{tpu_custom_call.1} parent=1 // pred_check_branch
      %19 = sbr.rel (0) target = $region9
    $region8: #{tpu_custom_call.1} parent=1 // pred_region
      %20 = dma.done [#allocation3], 256
    $region9: #{tpu_custom_call.1} parent=1 // pred_fallthru
      _
    %v21 = vld [vmem:[#allocation2] sm:$0xff]
    %v22 = vld [vmem:[#allocation2 + $0x8] sm:$0xff]
    %23 = vst [vmem:[#allocation5] sm:$0xff] %v21
    %24 = vst [vmem:[#allocation5 + $0x8] sm:$0xff] %v22
    // Predicated region
    $region10: #{tpu_custom_call.1} parent=1 // pred_check
      _
    $region11: #{tpu_custom_call.1} parent=1 // pred_check_branch
      %26 = sbr.rel (0) target = $region13
    $region12: #{tpu_custom_call.1} parent=1 // pred_region
      %s28 = ssub.s32 256, 256
      %29 = vsyncadd [#allocation4], %s28
      %s31 = sshll.u32 [#allocation5], 4
      %s32 = int_to_ptr.vmem [resolvable:$true] %s31
      %34 = dma.vmem_to_hbm [thread:$0]  %s32, 256, %s1, [#allocation4]
    $region13: #{tpu_custom_call.1} parent=1 // pred_fallthru
      _
    // Predicated region
    $region14: #{tpu_custom_call.1} parent=1 // pred_check
      _
    $region15: #{tpu_custom_call.1} parent=1 // pred_check_branch
      %36 = sbr.rel (0) target = $region17
    $region16: #{tpu_custom_call.1} parent=1 // pred_region
      %37 = dma.done [#allocation4], 256
    $region17: #{tpu_custom_call.1} parent=1 // pred_fallthru
      _
    %38 = vsyncpa [#allocation3], 1
    %39 = vsyncpa [#allocation4], 1

</llo_original>
